<compile_context>
chip_gen: v7x
topology: tpu7x:2x2x1
jax: 0.10.0
libtpu: 0.0.40
codegen_flags: <defaults>
</compile_context>

<pallas_src>
import functools

import numpy as np
import jax
import jax.numpy as jnp
from jax.experimental import pallas as pl
from jax.experimental.pallas import tpu as pltpu

EPS = 1e-5
MAX_PAD = 3      # largest padding among the k=3/5/7 convolutions
PAD_ROWS = 8     # zero-separator rows (shared between neighbours), 8-aligned
N_TAPS = 7       # fused kernel width (k=3/5/7 packed into 7 taps)

# shared separators must cover the tail pad of element b-1 AND the head pad of
# element b, and the roll wraparound must land inside discarded pad rows.
assert PAD_ROWS >= 2 * MAX_PAD
assert PAD_ROWS % 8 == 0


# ------------------------------ Pallas kernel ------------------------------

def _dense_layer_kernel(x_ref, s1_ref, b1_ref, w1_ref, s2_ref, b2_ref,
                        wt_ref, o_ref, wide_ref, *, k_pack):
    # x_ref block: (B_blk, L, Cin); wide_ref scratch: (R, 7*Cmid) in MXU dtype.
    B, L, Cin = x_ref.shape
    Cmid = w1_ref.shape[1]
    seg = L + PAD_ROWS
    R = wide_ref.shape[0]
    assert R == PAD_ROWS + B * seg

    # ---- bottleneck: BN1 -> ReLU -> 1x1 conv -> BN2 -> ReLU (batch fused)
    x = x_ref[...].reshape(B * L, Cin)
    h = jnp.maximum(x * s1_ref[...] + b1_ref[...], 0.0)        # f32 math
    y = jnp.dot(h.astype(w1_ref.dtype), w1_ref[...],
                preferred_element_type=jnp.float32)            # (B*L, Cmid)
    z = jnp.maximum(y * s2_ref[...] + b2_ref[...], 0.0)        # f32

    # ---- zero-separated slab: [Z8, x0, Z8, x1, ..., x_{B-1}, Z8].
    #      Separators are shared between neighbouring elements; every data
    #      offset is 8-row (sublane) aligned because L % 8 == 0.
    zsep = jnp.zeros((PAD_ROWS, Cmid), jnp.float32)
    pieces = [zsep]
    for b in range(B):
        pieces.append(z[b * L:(b + 1) * L, :])
        pieces.append(zsep)
    slab = jnp.concatenate(pieces, axis=0)                     # (R, Cmid) f32

    # ---- im2col along the MXU K axis:
    #      wide[r, t*Cmid + c] = slab[r + t - MAX_PAD, c]
    #      Shifts use pltpu.roll (XLU slot); the zero separators make them
    #      exact for every valid output row (wrapped rows land in pad rows).
    #      The cast to the MXU dtype happens exactly once, fused with the
    #      column-block store into the scratch.
    for t in range(N_TAPS):
        s = (MAX_PAD - t) % R
        piece = pltpu.roll(slab, shift=s, axis=0) if s else slab
        wide_ref[:, t * Cmid:(t + 1) * Cmid] = piece.astype(wide_ref.dtype)

    # ---- K-packed tap matmuls: one K = 7*Cmid matmul on v6e/v7x (<=256),
    #      two K <= 128 matmuls on v5e/v4 (k_pack chosen by the wrapper).
    acc = None
    for g0 in range(0, N_TAPS, k_pack):
        g1 = min(g0 + k_pack, N_TAPS)
        part = jnp.dot(wide_ref[:, g0 * Cmid:g1 * Cmid],
                       wt_ref[g0 * Cmid:g1 * Cmid, :],
                       preferred_element_type=jnp.float32)     # (R, n_out) f32
        acc = part if acc is None else acc + part

    # ---- store the valid L rows of each batch element directly from the
    #      accumulator (8-aligned static slices; no reshape/relayout copy).
    for b in range(B):
        r0 = PAD_ROWS + b * seg
        o_ref[b] = acc[r0:r0 + L, :].astype(o_ref.dtype)


# ----------------------- block sizing / HW heuristics -----------------------

def _hw_defaults():
    """(min_grid_steps, mxu_k_width) from the local TPU generation."""
    kind = ""
    try:
        kind = jax.devices()[0].device_kind.lower()
    except Exception:
        pass
    single_tc = ("v5 lite" in kind) or ("v5e" in kind) or ("v6" in kind)
    min_steps = 1 if single_tc else 2          # v7x: keep >=2 parallel steps
    narrow_mxu = any(v in kind for v in ("v2", "v3", "v4", "v5"))
    mxu_k = 128 if narrow_mxu else 256
    return min_steps, mxu_k


def _vmem_bytes_estimate(bblk, L, Cin, Cmid, n_out, mxu_bytes):
    """Conservative VMEM estimate (lane dims rounded up to 128, f32 temps)."""
    lane = lambda c: ((c + 127) // 128) * 128
    seg = L + PAD_ROWS
    R = PAD_ROWS + bblk * seg
    by = 0
    by += 2 * bblk * L * lane(Cin) * 4                     # x block (2x buffered)
    by += 2 * bblk * L * lane(n_out) * 4                   # out block (2x buffered)
    by += bblk * L * (2 * lane(Cin) + 3 * lane(Cmid)) * 4  # x/h/y/z temporaries
    by += 2 * R * lane(Cmid) * 4                           # slab + rolled copy
    by += R * lane(N_TAPS * Cmid) * mxu_bytes              # wide scratch
    by += 2 * R * lane(n_out) * 4                          # acc + store staging
    by += 2 * (Cin * lane(Cmid) + N_TAPS * Cmid * lane(n_out)) * mxu_bytes
    return by


def _pick_batch_block(N, L, Cin, Cmid, n_out, mxu_bytes,
                      min_grid_steps, vmem_budget_bytes):
    """Largest divisor of N that fits the VMEM budget and keeps the required
    number of grid steps (>=2 only on dual-TC chips)."""
    need_steps = min(min_grid_steps, N)
    best = 1
    for b in range(1, N + 1):
        if N % b:
            continue
        if N // b < need_steps:
            continue
        if _vmem_bytes_estimate(b, L, Cin, Cmid, n_out, mxu_bytes) \
                <= vmem_budget_bytes:
            best = b
    return best


# --------------------------------- wrapper ---------------------------------

def dense_layer_forward_nlc(x_nlc, folded, *, batch_block=None, k_pack=None,
                            mxu_dtype=jnp.bfloat16,
                            vmem_budget_bytes=32 * 1024 * 1024):
    """x_nlc: (N, L, Cin) channels-last (f32 or bf16).  Returns (N, L, 3*G) f32.

    mxu_dtype: MXU operand dtype (bf16 default on all generations, f32 accumulation).
    k_pack:    taps packed per matmul along K; default fills the MXU K width.
    """
    s1, b1, w1 = folded["s1"], folded["b1"], folded["w1"]
    s2, b2, wt = folded["s2"], folded["b2"], folded["wt"]
    n_out = wt.shape[-1]

    N, L, Cin = x_nlc.shape
    Cmid = w1.shape[1]
    assert L % 8 == 0, "L must be a multiple of 8 (sublane alignment)"
    assert wt.shape[0] == N_TAPS * Cmid

    min_steps, mxu_k = _hw_defaults()
    if k_pack is None:
        k_pack = max(1, min(N_TAPS, mxu_k // max(Cmid, 1)))
    mxu_bytes = jnp.dtype(mxu_dtype).itemsize
    if batch_block is None:
        batch_block = _pick_batch_block(N, L, Cin, Cmid, n_out, mxu_bytes,
                                        min_steps, vmem_budget_bytes)
    assert N % batch_block == 0

    R = PAD_ROWS + batch_block * (L + PAD_ROWS)

    # pre-cast weights once (bf16 halves weight DMA/VMEM; accumulation is f32)
    w1c = w1.astype(mxu_dtype)
    wtc = wt.astype(mxu_dtype)

    kernel = functools.partial(_dense_layer_kernel, k_pack=k_pack)

    out = pl.pallas_call(
        kernel,
        out_shape=jax.ShapeDtypeStruct((N, L, n_out), jnp.float32),
        grid_spec=pltpu.PrefetchScalarGridSpec(
            num_scalar_prefetch=0,
            grid=(N // batch_block,),
            in_specs=[
                pl.BlockSpec((batch_block, L, Cin), lambda n: (n, 0, 0)),  # x
                pl.BlockSpec((1, Cin), lambda n: (0, 0)),            # bn1 scale
                pl.BlockSpec((1, Cin), lambda n: (0, 0)),            # bn1 bias
                pl.BlockSpec((Cin, Cmid), lambda n: (0, 0)),         # conv1 w
                pl.BlockSpec((1, Cmid), lambda n: (0, 0)),           # bn2 scale
                pl.BlockSpec((1, Cmid), lambda n: (0, 0)),           # bn2 bias
                pl.BlockSpec((N_TAPS * Cmid, n_out), lambda n: (0, 0)),  # taps
            ],
            out_specs=pl.BlockSpec((batch_block, L, n_out),
                                   lambda n: (n, 0, 0)),
            scratch_shapes=[pltpu.VMEM((R, N_TAPS * Cmid), mxu_dtype)],
        ),
        compiler_params=pltpu.CompilerParams(
            dimension_semantics=("parallel",),
            vmem_limit_bytes=vmem_budget_bytes + (16 << 20)),
    )(x_nlc, s1, b1, w1c, s2, b2, wtc)
    return out


def dense_layer_forward_ncl(x_ncl, folded, **kw):
    """PyTorch-layout (N, C, L) compatibility wrapper (adds HBM transposes)."""
    out_nlc = dense_layer_forward_nlc(jnp.transpose(x_ncl, (0, 2, 1)),
                                      folded, **kw)
    return jnp.transpose(out_nlc, (0, 2, 1))


# ------------------------- parameter setup (glue) --------------------------

def make_params(key, input_c, growth_rate, bn_size):
    Cmid = bn_size * growth_rate
    G = growth_rate
    n_out = 3 * G
    ks = jax.random.split(key, 12)

    def unif(k, shape, lo, hi):
        return jax.random.uniform(k, shape, jnp.float32, lo, hi)

    # raw PyTorch-convention parameters
    gamma1 = unif(ks[0], (input_c,), 0.5, 1.5)
    beta1 = unif(ks[1], (input_c,), -0.5, 0.5)
    rm1 = unif(ks[2], (input_c,), -0.5, 0.5)
    rv1 = unif(ks[3], (input_c,), 0.5, 1.5)
    w_conv1 = 0.1 * jax.random.normal(ks[4], (Cmid, input_c, 1), jnp.float32)

    gamma2 = unif(ks[5], (Cmid,), 0.5, 1.5)
    beta2 = unif(ks[6], (Cmid,), -0.5, 0.5)
    rm2 = unif(ks[7], (Cmid,), -0.5, 0.5)
    rv2 = unif(ks[8], (Cmid,), 0.5, 1.5)
    w_conv2 = 0.1 * jax.random.normal(ks[9], (G, Cmid, 3), jnp.float32)
    w_conv3 = 0.1 * jax.random.normal(ks[10], (G, Cmid, 5), jnp.float32)
    w_conv4 = 0.1 * jax.random.normal(ks[11], (G, Cmid, 7), jnp.float32)

    raw = (gamma1, beta1, rm1, rv1, w_conv1,
           gamma2, beta2, rm2, rv2, w_conv2, w_conv3, w_conv4)

    # fold BN (eval) into scale/bias
    s1 = gamma1 / jnp.sqrt(rv1 + EPS)
    b1 = beta1 - rm1 * s1
    s2 = gamma2 / jnp.sqrt(rv2 + EPS)
    b2 = beta2 - rm2 * s2

    # fuse the three tap convs into one zero-padded 7-tap weight and flatten it
    # tap-major to (7*Cmid, n_out) for the K-packed matmul.
    # PyTorch conv weight is (G, Cmid, K); tap t corresponds to offset t - MAX_PAD.
    w7 = jnp.zeros((N_TAPS, Cmid, n_out), jnp.float32)
    w7 = w7.at[2:5, :, 0:G].set(jnp.transpose(w_conv2, (2, 1, 0)))          # k=3
    w7 = w7.at[1:6, :, G:2 * G].set(jnp.transpose(w_conv3, (2, 1, 0)))      # k=5
    w7 = w7.at[0:7, :, 2 * G:3 * G].set(jnp.transpose(w_conv4, (2, 1, 0)))  # k=7

    folded = dict(
        s1=s1.reshape(1, input_c), b1=b1.reshape(1, input_c),
        w1=jnp.transpose(w_conv1[:, :, 0], (1, 0)),          # (Cin, Cmid)
        s2=s2.reshape(1, Cmid), b2=b2.reshape(1, Cmid),
        wt=w7.reshape(N_TAPS * Cmid, n_out), n_out=n_out)
    return raw, folded


def ref_forward(x_ncl, raw):
    """Plain-JAX reference (independent formulation via lax.conv, NCL)."""
    (gamma1, beta1, rm1, rv1, w1,
     gamma2, beta2, rm2, rv2, w2, w3, w4) = raw

    def bn(x, g, b, m, v):
        return (x - m[None, :, None]) / jnp.sqrt(v[None, :, None] + EPS) \
               * g[None, :, None] + b[None, :, None]

    def conv1d(x, w, pad):
        return jax.lax.conv_general_dilated(
            x, w, (1,), [(pad, pad)], dimension_numbers=('NCH', 'OIH', 'NCH'))

    h = jnp.maximum(bn(x_ncl, gamma1, beta1, rm1, rv1), 0.0)
    y = conv1d(h, w1, 0)
    z = jnp.maximum(bn(y, gamma2, beta2, rm2, rv2), 0.0)
    return jnp.concatenate(
        [conv1d(z, w2, 1), conv1d(z, w3, 2), conv1d(z, w4, 3)], axis=1)


if __name__ == "__main__":
    # small shapes consistent with the module: N=4, input_c=16, L=16,
    # growth_rate=8, bn_size=4  ->  bottleneck=32, output channels=24
    N, input_c, L = 4, 16, 16
    growth_rate, bn_size = 8, 4

    key = jax.random.PRNGKey(0)
    kx, kp = jax.random.split(key)
    x_ncl = jax.random.normal(kx, (N, input_c, L), jnp.float32)

    raw, folded = make_params(kp, input_c, growth_rate, bn_size)

    ref_ncl = jax.block_until_ready(ref_forward(x_ncl, raw))
    ref_nlc = jnp.transpose(ref_ncl, (0, 2, 1))

    # hot path: NLC in / NLC out, bf16 MXU operands (default), f32 accumulation
    x_nlc = jnp.transpose(x_ncl, (0, 2, 1))
    out_bf16 = jax.block_until_ready(dense_layer_forward_nlc(x_nlc, folded))
    assert out_bf16.shape == (N, L, 3 * growth_rate), out_bf16.shape
    np.testing.assert_allclose(np.asarray(out_bf16), np.asarray(ref_nlc),
                               rtol=1e-1, atol=1e-1)

    # f32 MXU-operand path: tight check of the kernel math
    out_f32 = jax.block_until_ready(
        dense_layer_forward_nlc(x_nlc, folded, mxu_dtype=jnp.float32))
    np.testing.assert_allclose(np.asarray(out_f32), np.asarray(ref_nlc),
                               rtol=1e-4, atol=1e-4)

    # v5e-style K packing (two K<=128 matmuls), f32 for a tight check
    out_kp4 = jax.block_until_ready(
        dense_layer_forward_nlc(x_nlc, folded, k_pack=4,
                                mxu_dtype=jnp.float32))
    np.testing.assert_allclose(np.asarray(out_kp4), np.asarray(ref_nlc),
                               rtol=1e-4, atol=1e-4)

    # PyTorch-layout compatibility wrapper (NCL in / NCL out)
    out_ncl = jax.block_until_ready(
        dense_layer_forward_ncl(x_ncl, folded, mxu_dtype=jnp.float32))
    np.testing.assert_allclose(np.asarray(out_ncl), np.asarray(ref_ncl),
                               rtol=1e-4, atol=1e-4)

    print("KERNEL_OK")
</pallas_src>

<mosaic_0001>
module attributes {stable_mosaic.version = 11 : i64} {
  func.func @_dense_layer_kernel(%arg0: i32, %arg1: memref<2x16x16xf32, #tpu.memory_space<vmem>>, %arg2: memref<1x16xf32, #tpu.memory_space<vmem>>, %arg3: memref<1x16xf32, #tpu.memory_space<vmem>>, %arg4: memref<16x32xbf16, #tpu.memory_space<vmem>>, %arg5: memref<1x32xf32, #tpu.memory_space<vmem>>, %arg6: memref<1x32xf32, #tpu.memory_space<vmem>>, %arg7: memref<224x24xbf16, #tpu.memory_space<vmem>>, %arg8: memref<2x16x24xf32, #tpu.memory_space<vmem>>, %arg9: memref<56x224xbf16, #tpu.memory_space<vmem>>) attributes {dimension_semantics = [#tpu.dimension_semantics<parallel>], iteration_bounds = array<i64: 2>, scalar_prefetch = 0 : i64, scratch_operands = 1 : i64, tpu.core_type = #tpu.core_type<tc>, window_params = [{transform_indices = @transform_0, window_bounds = array<i64: 2, 16, 16>}, {pipeline_mode = #tpu.pipeline_mode<synchronous>, transform_indices = @transform_1, window_bounds = array<i64: 1, 16>}, {pipeline_mode = #tpu.pipeline_mode<synchronous>, transform_indices = @transform_2, window_bounds = array<i64: 1, 16>}, {pipeline_mode = #tpu.pipeline_mode<synchronous>, transform_indices = @transform_3, window_bounds = array<i64: 16, 32>}, {pipeline_mode = #tpu.pipeline_mode<synchronous>, transform_indices = @transform_4, window_bounds = array<i64: 1, 32>}, {pipeline_mode = #tpu.pipeline_mode<synchronous>, transform_indices = @transform_5, window_bounds = array<i64: 1, 32>}, {pipeline_mode = #tpu.pipeline_mode<synchronous>, transform_indices = @transform_6, window_bounds = array<i64: 224, 24>}, {transform_indices = @transform_7, window_bounds = array<i64: 2, 16, 24>}]} {
    %c0 = arith.constant 0 : index
    %c0_0 = arith.constant 0 : index
    %c0_1 = arith.constant 0 : index
    %0 = vector.load %arg1[%c0, %c0_0, %c0_1] : memref<2x16x16xf32, #tpu.memory_space<vmem>>, vector<2x16x16xf32>
    %1 = vector.shape_cast %0 : vector<2x16x16xf32> to vector<32x16xf32>
    %c0_2 = arith.constant 0 : index
    %c0_3 = arith.constant 0 : index
    %2 = vector.load %arg2[%c0_2, %c0_3] : memref<1x16xf32, #tpu.memory_space<vmem>>, vector<1x16xf32>
    %3 = vector.broadcast %2 : vector<1x16xf32> to vector<32x16xf32>
    %4 = arith.mulf %1, %3 : vector<32x16xf32>
    %c0_4 = arith.constant 0 : index
    %c0_5 = arith.constant 0 : index
    %5 = vector.load %arg3[%c0_4, %c0_5] : memref<1x16xf32, #tpu.memory_space<vmem>>, vector<1x16xf32>
    %6 = vector.broadcast %5 : vector<1x16xf32> to vector<32x16xf32>
    %7 = arith.addf %4, %6 : vector<32x16xf32>
    %cst = arith.constant 0.000000e+00 : f32
    %8 = vector.broadcast %cst : f32 to vector<32x16xf32>
    %9 = arith.maximumf %7, %8 : vector<32x16xf32>
    %10 = arith.truncf %9 : vector<32x16xf32> to vector<32x16xbf16>
    %c0_6 = arith.constant 0 : index
    %c0_7 = arith.constant 0 : index
    %11 = vector.load %arg4[%c0_6, %c0_7] : memref<16x32xbf16, #tpu.memory_space<vmem>>, vector<16x32xbf16>
    %cst_8 = arith.constant dense<0.000000e+00> : vector<32x32xf32>
    %12 = tpu.matmul %10, %11, %cst_8 {dimension_numbers = #tpu.dot_dimension_numbers<[1], [0], [0], [1], [0, 0, 1, 1], [], []>} : vector<32x16xbf16>, vector<16x32xbf16>, vector<32x32xf32> -> vector<32x32xf32>
    %c0_9 = arith.constant 0 : index
    %c0_10 = arith.constant 0 : index
    %13 = vector.load %arg5[%c0_9, %c0_10] : memref<1x32xf32, #tpu.memory_space<vmem>>, vector<1x32xf32>
    %14 = vector.broadcast %13 : vector<1x32xf32> to vector<32x32xf32>
    %15 = arith.mulf %12, %14 : vector<32x32xf32>
    %c0_11 = arith.constant 0 : index
    %c0_12 = arith.constant 0 : index
    %16 = vector.load %arg6[%c0_11, %c0_12] : memref<1x32xf32, #tpu.memory_space<vmem>>, vector<1x32xf32>
    %17 = vector.broadcast %16 : vector<1x32xf32> to vector<32x32xf32>
    %18 = arith.addf %15, %17 : vector<32x32xf32>
    %cst_13 = arith.constant 0.000000e+00 : f32
    %19 = vector.broadcast %cst_13 : f32 to vector<32x32xf32>
    %20 = arith.maximumf %18, %19 : vector<32x32xf32>
    %cst_14 = arith.constant 0.000000e+00 : f32
    %21 = vector.broadcast %cst_14 : f32 to vector<8x32xf32>
    %22 = vector.extract_strided_slice %20 {offsets = [0, 0], sizes = [16, 32], strides = [1, 1]} : vector<32x32xf32> to vector<16x32xf32>
    %23 = vector.extract_strided_slice %20 {offsets = [16, 0], sizes = [16, 32], strides = [1, 1]} : vector<32x32xf32> to vector<16x32xf32>
    %24 = tpu.concatenate %21, %22, %21, %23, %21 in 0 : vector<8x32xf32>, vector<16x32xf32>, vector<8x32xf32>, vector<16x32xf32>, vector<8x32xf32> -> vector<56x32xf32>
    %c3_i32 = arith.constant 3 : i32
    %25 = tpu.dynamic_rotate %24 by %c3_i32 dim 0 : vector<56x32xf32>, i32 -> vector<56x32xf32>
    %26 = arith.truncf %25 : vector<56x32xf32> to vector<56x32xbf16>
    %c0_15 = arith.constant 0 : index
    %c0_16 = arith.constant 0 : index
    %27 = vector.load %arg9[%c0_15, %c0_16] : memref<56x224xbf16, #tpu.memory_space<vmem>>, vector<56x32xbf16>
    tpu.vector_store %arg9[%c0_15, %c0_16], %26 {strides = array<i32>} : memref<56x224xbf16, #tpu.memory_space<vmem>>, vector<56x32xbf16>,
    %c2_i32 = arith.constant 2 : i32
    %28 = tpu.dynamic_rotate %24 by %c2_i32 dim 0 : vector<56x32xf32>, i32 -> vector<56x32xf32>
    %29 = arith.truncf %28 : vector<56x32xf32> to vector<56x32xbf16>
    %c0_17 = arith.constant 0 : index
    %c32 = arith.constant 32 : index
    %30 = vector.load %arg9[%c0_17, %c32] : memref<56x224xbf16, #tpu.memory_space<vmem>>, vector<56x32xbf16>
    tpu.vector_store %arg9[%c0_17, %c32], %29 {strides = array<i32>} : memref<56x224xbf16, #tpu.memory_space<vmem>>, vector<56x32xbf16>,
    %c1_i32 = arith.constant 1 : i32
    %31 = tpu.dynamic_rotate %24 by %c1_i32 dim 0 : vector<56x32xf32>, i32 -> vector<56x32xf32>
    %32 = arith.truncf %31 : vector<56x32xf32> to vector<56x32xbf16>
    %c0_18 = arith.constant 0 : index
    %c64 = arith.constant 64 : index
    %33 = vector.load %arg9[%c0_18, %c64] : memref<56x224xbf16, #tpu.memory_space<vmem>>, vector<56x32xbf16>
    tpu.vector_store %arg9[%c0_18, %c64], %32 {strides = array<i32>} : memref<56x224xbf16, #tpu.memory_space<vmem>>, vector<56x32xbf16>,
    %34 = arith.truncf %24 : vector<56x32xf32> to vector<56x32xbf16>
    %c0_19 = arith.constant 0 : index
    %c96 = arith.constant 96 : index
    %35 = vector.load %arg9[%c0_19, %c96] : memref<56x224xbf16, #tpu.memory_space<vmem>>, vector<56x32xbf16>
    tpu.vector_store %arg9[%c0_19, %c96], %34 {strides = array<i32>} : memref<56x224xbf16, #tpu.memory_space<vmem>>, vector<56x32xbf16>,
    %c55_i32 = arith.constant 55 : i32
    %36 = tpu.dynamic_rotate %24 by %c55_i32 dim 0 : vector<56x32xf32>, i32 -> vector<56x32xf32>
    %37 = arith.truncf %36 : vector<56x32xf32> to vector<56x32xbf16>
    %c0_20 = arith.constant 0 : index
    %c128 = arith.constant 128 : index
    %38 = vector.load %arg9[%c0_20, %c128] : memref<56x224xbf16, #tpu.memory_space<vmem>>, vector<56x32xbf16>
    tpu.vector_store %arg9[%c0_20, %c128], %37 {strides = array<i32>} : memref<56x224xbf16, #tpu.memory_space<vmem>>, vector<56x32xbf16>,
    %c54_i32 = arith.constant 54 : i32
    %39 = tpu.dynamic_rotate %24 by %c54_i32 dim 0 : vector<56x32xf32>, i32 -> vector<56x32xf32>
    %40 = arith.truncf %39 : vector<56x32xf32> to vector<56x32xbf16>
    %c0_21 = arith.constant 0 : index
    %c160 = arith.constant 160 : index
    %41 = vector.load %arg9[%c0_21, %c160] : memref<56x224xbf16, #tpu.memory_space<vmem>>, vector<56x32xbf16>
    tpu.vector_store %arg9[%c0_21, %c160], %40 {strides = array<i32>} : memref<56x224xbf16, #tpu.memory_space<vmem>>, vector<56x32xbf16>,
    %c53_i32 = arith.constant 53 : i32
    %42 = tpu.dynamic_rotate %24 by %c53_i32 dim 0 : vector<56x32xf32>, i32 -> vector<56x32xf32>
    %43 = arith.truncf %42 : vector<56x32xf32> to vector<56x32xbf16>
    %c0_22 = arith.constant 0 : index
    %c192 = arith.constant 192 : index
    %44 = vector.load %arg9[%c0_22, %c192] : memref<56x224xbf16, #tpu.memory_space<vmem>>, vector<56x32xbf16>
    tpu.vector_store %arg9[%c0_22, %c192], %43 {strides = array<i32>} : memref<56x224xbf16, #tpu.memory_space<vmem>>, vector<56x32xbf16>,
    %c0_23 = arith.constant 0 : index
    %c0_24 = arith.constant 0 : index
    %45 = vector.load %arg9[%c0_23, %c0_24] : memref<56x224xbf16, #tpu.memory_space<vmem>>, vector<56x224xbf16>
    %c0_25 = arith.constant 0 : index
    %c0_26 = arith.constant 0 : index
    %46 = vector.load %arg7[%c0_25, %c0_26] : memref<224x24xbf16, #tpu.memory_space<vmem>>, vector<224x24xbf16>
    %cst_27 = arith.constant dense<0.000000e+00> : vector<56x24xf32>
    %47 = tpu.matmul %45, %46, %cst_27 {dimension_numbers = #tpu.dot_dimension_numbers<[1], [0], [0], [1], [0, 0, 1, 1], [], []>} : vector<56x224xbf16>, vector<224x24xbf16>, vector<56x24xf32> -> vector<56x24xf32>
    %48 = vector.extract_strided_slice %47 {offsets = [8, 0], sizes = [16, 24], strides = [1, 1]} : vector<56x24xf32> to vector<16x24xf32>
    %c0_28 = arith.constant 0 : index
    %c0_29 = arith.constant 0 : index
    %c0_30 = arith.constant 0 : index
    %49 = vector.load %arg8[%c0_28, %c0_29, %c0_30] : memref<2x16x24xf32, #tpu.memory_space<vmem>>, vector<1x16x24xf32>
    %50 = vector.shape_cast %49 : vector<1x16x24xf32> to vector<16x24xf32>
    %51 = vector.shape_cast %48 : vector<16x24xf32> to vector<1x16x24xf32>
    tpu.vector_store %arg8[%c0_28, %c0_29, %c0_30], %51 {strides = array<i32>} : memref<2x16x24xf32, #tpu.memory_space<vmem>>, vector<1x16x24xf32>,
    %52 = vector.extract_strided_slice %47 {offsets = [32, 0], sizes = [16, 24], strides = [1, 1]} : vector<56x24xf32> to vector<16x24xf32>
    %c1 = arith.constant 1 : index
    %c0_31 = arith.constant 0 : index
    %c0_32 = arith.constant 0 : index
    %53 = vector.load %arg8[%c1, %c0_31, %c0_32] : memref<2x16x24xf32, #tpu.memory_space<vmem>>, vector<1x16x24xf32>
    %54 = vector.shape_cast %53 : vector<1x16x24xf32> to vector<16x24xf32>
    %55 = vector.shape_cast %52 : vector<16x24xf32> to vector<1x16x24xf32>
    tpu.vector_store %arg8[%c1, %c0_31, %c0_32], %55 {strides = array<i32>} : memref<2x16x24xf32, #tpu.memory_space<vmem>>, vector<1x16x24xf32>,
    return
  }
  func.func @transform_0(%arg0: i32) -> (i32, i32, i32) {
    %c0_i32 = arith.constant 0 : i32
    %c0_i32_0 = arith.constant 0 : i32
    %c0_i32_1 = arith.constant 0 : i32
    return %arg0, %c0_i32, %c0_i32_0 : i32, i32, i32
  }
  func.func @transform_1(%arg0: i32) -> (i32, i32) {
    %c0_i32 = arith.constant 0 : i32
    %c0_i32_0 = arith.constant 0 : i32
    %c0_i32_1 = arith.constant 0 : i32
    return %c0_i32, %c0_i32_0 : i32, i32
  }
  func.func @transform_2(%arg0: i32) -> (i32, i32) {
    %c0_i32 = arith.constant 0 : i32
    %c0_i32_0 = arith.constant 0 : i32
    %c0_i32_1 = arith.constant 0 : i32
    return %c0_i32, %c0_i32_0 : i32, i32
  }
  func.func @transform_3(%arg0: i32) -> (i32, i32) {
    %c0_i32 = arith.constant 0 : i32
    %c0_i32_0 = arith.constant 0 : i32
    %c0_i32_1 = arith.constant 0 : i32
    return %c0_i32, %c0_i32_0 : i32, i32
  }
  func.func @transform_4(%arg0: i32) -> (i32, i32) {
    %c0_i32 = arith.constant 0 : i32
    %c0_i32_0 = arith.constant 0 : i32
    %c0_i32_1 = arith.constant 0 : i32
    return %c0_i32, %c0_i32_0 : i32, i32
  }
  func.func @transform_5(%arg0: i32) -> (i32, i32) {
    %c0_i32 = arith.constant 0 : i32
    %c0_i32_0 = arith.constant 0 : i32
    %c0_i32_1 = arith.constant 0 : i32
    return %c0_i32, %c0_i32_0 : i32, i32
  }
  func.func @transform_6(%arg0: i32) -> (i32, i32) {
    %c0_i32 = arith.constant 0 : i32
    %c0_i32_0 = arith.constant 0 : i32
    %c0_i32_1 = arith.constant 0 : i32
    return %c0_i32, %c0_i32_0 : i32, i32
  }
  func.func @transform_7(%arg0: i32) -> (i32, i32, i32) {
    %c0_i32 = arith.constant 0 : i32
    %c0_i32_0 = arith.constant 0 : i32
    %c0_i32_1 = arith.constant 0 : i32
    return %arg0, %c0_i32, %c0_i32_0 : i32, i32, i32
  }
}

</mosaic_0001>

<llo_original>
// kernel: tpu_custom_call.1
$region0: #{tpu_custom_call.1}
  #allocation0 [shape = 'u32[]', space=smem, size = 0x4, offset = 0x4, fixed_abs, tag = 'smem constant byte address 0x4 - core index']
  #allocation1 [shape = 'u32[144,128]{1,0:T(1,128)}', space=vmem, size = 0x12000, scoped, tag = 'internal scratch']
  #allocation2 [shape = 'bf16[56,224]{1,0:T(8,128)(2,1)}', space=vmem, size = 0x7000, scoped, tag = 'scratch operand']
  %s0 = inlined_call_operand.vmem [shape: f32[4,16,16], index: 0, kind: input, shape index: {}]
  %s1 = inlined_call_operand.vmem [shape: f32[1,16], index: 1, kind: input, shape index: {}]
  %s2 = inlined_call_operand.vmem [shape: f32[1,16], index: 2, kind: input, shape index: {}]
  %s3 = inlined_call_operand.vmem [shape: bf16[16,32], index: 3, kind: input, shape index: {}]
  %s4 = inlined_call_operand.vmem [shape: f32[1,32], index: 4, kind: input, shape index: {}]
  %s5 = inlined_call_operand.vmem [shape: f32[1,32], index: 5, kind: input, shape index: {}]
  %s6 = inlined_call_operand.vmem [shape: bf16[224,24], index: 6, kind: input, shape index: {}]
  %s7 = inlined_call_operand.hbm [shape: f32[4,16,24], index: 7, kind: output, shape index: {}]
  %s8 = sld [smem:[#allocation0]]
  $region61: #{tpu_custom_call.1} parent=0
    _
  %s10 = ssub.s32 1, %s8
  %s11 = scalar_select 0, %s10, %s8
  $region1: #{tpu_custom_call.1} parent=0
    #allocation3 [shape = 'u8[32768]{0}', space=vmem, size = 0x8000, scoped, tag = 'output window, operand 0']
    #allocation4 [shape = 's32[2]{0}', space=sflag, size = 0x8, scoped, tag = 'scoped memory for tpu_custom_call.1']
    %12 = vsyncpa [#allocation4], 0
    %s13 = scalar_lea.sflag [#allocation4], 1
    %14 = vsyncpa %s13, 0
    loop: start=0, step=1, limit=4
    $region2: #{tpu_custom_call.1} parent=1 // loop_pre_header
      _
    $region3: #{tpu_custom_call.1} parent=1 // loop_header
      %s16 = sphi 0, %s20
      %p17 = scmp.ge.s32.totalorder %s16, 4
      %s26 = sphi 0, %s28
      %s29 = sphi 0, %s26
      %s30 = sphi 0, %s29
      %s46 = sphi 0, %s30
      %s50 = sphi 0, %s50
      %s52 = sphi 0, %s50
      %s53 = sphi 0, %s52
      %s67 = sphi 0, %s53
      %s71 = sphi 0, %s71
      %s73 = sphi 0, %s71
      %s74 = sphi 0, %s73
      %s88 = sphi 0, %s74
      %s92 = sphi 0, %s92
      %s94 = sphi 0, %s92
      %s95 = sphi 0, %s94
      %s109 = sphi 0, %s95
      %s113 = sphi 0, %s113
      %s115 = sphi 0, %s113
      %s116 = sphi 0, %s115
      %s130 = sphi 0, %s116
      %s134 = sphi 0, %s134
      %s136 = sphi 0, %s134
      %s137 = sphi 0, %s136
      %s151 = sphi 0, %s137
      %s155 = sphi 0, %s155
      %s157 = sphi 0, %s155
      %s158 = sphi 0, %s157
      %s172 = sphi 0, %s158
      %s178 = sphi 0, %s180
      %s181 = sphi 0, %s178
      %s182 = sphi 0, %s181
      %s198 = sphi 0, %s182
    $region4: #{tpu_custom_call.1} parent=1 // loop_header_branch
      %19 = sbr.rel (%p17) target = $region8
    $region5: #{tpu_custom_call.1} parent=1 // loop_body
      %s21 = ssub.s32 %s16, 1
      %s22 = ssub.s32 %s16, 2
      %s23 = sadd.s32 %s16, 1
      %s24 = ssub.s32 %s16, %s23
      %p25 = scmp.eq.s32.totalorder %s24, 0
      %s27 = sadd.s32 %s26, 1
      %s28 = scalar_select %p25, %s26, %s27
      %p31 = pneg %p25
      %p32 = scmp.eq.s32.totalorder %s16, 1
      %p33 = por %p31, %p32
      %p34 = scmp.ne.s32.totalorder %s26, %s29
      %p35 = scmp.eq.s32.totalorder %s16, 0
      %p36 = por %p34, %p35
      %p37 = scmp.ne.s32.totalorder %s26, %s29
      %p38 = scmp.eq.s32.totalorder %s21, 1
      %p39 = por %p37, %p38
      %p40 = scmp.ne.s32.totalorder %s29, %s30
      %p41 = scmp.eq.s32.totalorder %s21, 0
      %p42 = por %p40, %p41
      %p43 = scmp.ne.s32.totalorder %s29, %s30
      %p44 = scmp.eq.s32.totalorder %s22, 1
      %p45 = por %p43, %p44
      %p47 = scmp.ne.s32.totalorder %s30, %s46
      %p48 = scmp.eq.s32.totalorder %s22, 0
      %p49 = por %p47, %p48
      %s51 = sadd.s32 %s50, 1
      %p54 = scmp.eq.s32.totalorder %s16, 1
      %p55 = scmp.ne.s32.totalorder %s50, %s52
      %p56 = scmp.eq.s32.totalorder %s16, 0
      %p57 = por %p55, %p56
      %p58 = scmp.ne.s32.totalorder %s50, %s52
      %p59 = scmp.eq.s32.totalorder %s21, 1
      %p60 = por %p58, %p59
      %p61 = scmp.ne.s32.totalorder %s52, %s53
      %p62 = scmp.eq.s32.totalorder %s21, 0
      %p63 = por %p61, %p62
      %p64 = scmp.ne.s32.totalorder %s52, %s53
      %p65 = scmp.eq.s32.totalorder %s22, 1
      %p66 = por %p64, %p65
      %p68 = scmp.ne.s32.totalorder %s53, %s67
      %p69 = scmp.eq.s32.totalorder %s22, 0
      %p70 = por %p68, %p69
      %s72 = sadd.s32 %s71, 1
      %p75 = scmp.eq.s32.totalorder %s16, 1
      %p76 = scmp.ne.s32.totalorder %s71, %s73
      %p77 = scmp.eq.s32.totalorder %s16, 0
      %p78 = por %p76, %p77
      %p79 = scmp.ne.s32.totalorder %s71, %s73
      %p80 = scmp.eq.s32.totalorder %s21, 1
      %p81 = por %p79, %p80
      %p82 = scmp.ne.s32.totalorder %s73, %s74
      %p83 = scmp.eq.s32.totalorder %s21, 0
      %p84 = por %p82, %p83
      %p85 = scmp.ne.s32.totalorder %s73, %s74
      %p86 = scmp.eq.s32.totalorder %s22, 1
      %p87 = por %p85, %p86
      %p89 = scmp.ne.s32.totalorder %s74, %s88
      %p90 = scmp.eq.s32.totalorder %s22, 0
      %p91 = por %p89, %p90
      %s93 = sadd.s32 %s92, 1
      %p96 = scmp.eq.s32.totalorder %s16, 1
      %p97 = scmp.ne.s32.totalorder %s92, %s94
      %p98 = scmp.eq.s32.totalorder %s16, 0
      %p99 = por %p97, %p98
      %p100 = scmp.ne.s32.totalorder %s92, %s94
      %p101 = scmp.eq.s32.totalorder %s21, 1
      %p102 = por %p100, %p101
      %p103 = scmp.ne.s32.totalorder %s94, %s95
      %p104 = scmp.eq.s32.totalorder %s21, 0
      %p105 = por %p103, %p104
      %p106 = scmp.ne.s32.totalorder %s94, %s95
      %p107 = scmp.eq.s32.totalorder %s22, 1
      %p108 = por %p106, %p107
      %p110 = scmp.ne.s32.totalorder %s95, %s109
      %p111 = scmp.eq.s32.totalorder %s22, 0
      %p112 = por %p110, %p111
      %s114 = sadd.s32 %s113, 1
      %p117 = scmp.eq.s32.totalorder %s16, 1
      %p118 = scmp.ne.s32.totalorder %s113, %s115
      %p119 = scmp.eq.s32.totalorder %s16, 0
      %p120 = por %p118, %p119
      %p121 = scmp.ne.s32.totalorder %s113, %s115
      %p122 = scmp.eq.s32.totalorder %s21, 1
      %p123 = por %p121, %p122
      %p124 = scmp.ne.s32.totalorder %s115, %s116
      %p125 = scmp.eq.s32.totalorder %s21, 0
      %p126 = por %p124, %p125
      %p127 = scmp.ne.s32.totalorder %s115, %s116
      %p128 = scmp.eq.s32.totalorder %s22, 1
      %p129 = por %p127, %p128
      %p131 = scmp.ne.s32.totalorder %s116, %s130
      %p132 = scmp.eq.s32.totalorder %s22, 0
      %p133 = por %p131, %p132
      %s135 = sadd.s32 %s134, 1
      %p138 = scmp.eq.s32.totalorder %s16, 1
      %p139 = scmp.ne.s32.totalorder %s134, %s136
      %p140 = scmp.eq.s32.totalorder %s16, 0
      %p141 = por %p139, %p140
      %p142 = scmp.ne.s32.totalorder %s134, %s136
      %p143 = scmp.eq.s32.totalorder %s21, 1
      %p144 = por %p142, %p143
      %p145 = scmp.ne.s32.totalorder %s136, %s137
      %p146 = scmp.eq.s32.totalorder %s21, 0
      %p147 = por %p145, %p146
      %p148 = scmp.ne.s32.totalorder %s136, %s137
      %p149 = scmp.eq.s32.totalorder %s22, 1
      %p150 = por %p148, %p149
      %p152 = scmp.ne.s32.totalorder %s137, %s151
      %p153 = scmp.eq.s32.totalorder %s22, 0
      %p154 = por %p152, %p153
      %s156 = sadd.s32 %s155, 1
      %p159 = scmp.eq.s32.totalorder %s16, 1
      %p160 = scmp.ne.s32.totalorder %s155, %s157
      %p161 = scmp.eq.s32.totalorder %s16, 0
      %p162 = por %p160, %p161
      %p163 = scmp.ne.s32.totalorder %s155, %s157
      %p164 = scmp.eq.s32.totalorder %s21, 1
      %p165 = por %p163, %p164
      %p166 = scmp.ne.s32.totalorder %s157, %s158
      %p167 = scmp.eq.s32.totalorder %s21, 0
      %p168 = por %p166, %p167
      %p169 = scmp.ne.s32.totalorder %s157, %s158
      %p170 = scmp.eq.s32.totalorder %s22, 1
      %p171 = por %p169, %p170
      %p173 = scmp.ne.s32.totalorder %s158, %s172
      %p174 = scmp.eq.s32.totalorder %s22, 0
      %p175 = por %p173, %p174
      %s176 = ssub.s32 %s16, %s23
      %p177 = scmp.eq.s32.totalorder %s176, 0
      %s179 = sadd.s32 %s178, 1
      %s180 = scalar_select %p177, %s178, %s179
      %p183 = pneg %p177
      %p184 = scmp.eq.s32.totalorder %s16, 1
      %p185 = por %p183, %p184
      %p186 = scmp.ne.s32.totalorder %s178, %s181
      %p187 = scmp.eq.s32.totalorder %s16, 0
      %p188 = por %p186, %p187
      %p189 = scmp.ne.s32.totalorder %s178, %s181
      %p190 = scmp.eq.s32.totalorder %s21, 1
      %p191 = por %p189, %p190
      %p192 = scmp.ne.s32.totalorder %s181, %s182
      %p193 = scmp.eq.s32.totalorder %s21, 0
      %p194 = por %p192, %p193
      %p195 = scmp.ne.s32.totalorder %s181, %s182
      %p196 = scmp.eq.s32.totalorder %s22, 1
      %p197 = por %p195, %p196
      %p199 = scmp.ne.s32.totalorder %s182, %s198
      %p200 = scmp.eq.s32.totalorder %s22, 0
      %p201 = por %p199, %p200
      %p202 = scmp.le.s32.totalorder 1, %s16
      %p203 = scmp.lt.s32.totalorder %s16, 3
      %p204 = pnand %p202, %p203
      %p205 = pneg %p204
      // Predicated region
      $region9: #{tpu_custom_call.1} parent=5 // pred_check
        _
      $region10: #{tpu_custom_call.1} parent=5 // pred_check_branch
        %207 = sbr.rel (%p204) target = $region12
      $region11: #{tpu_custom_call.1} parent=5 // pred_region
        %s208 = ssub.s32 %s16, 1
        // Predicated region
        $region13: #{tpu_custom_call.1} parent=11 // pred_check
          %p209 = pneg %p63
        $region14: #{tpu_custom_call.1} parent=11 // pred_check_branch
          %211 = sbr.rel (%p209) target = $region16
        $region15: #{tpu_custom_call.1} parent=11 // pred_region
          _
        $region16: #{tpu_custom_call.1} parent=11 // pred_fallthru
          _
        // Predicated region
        $region17: #{tpu_custom_call.1} parent=11 // pred_check
          %p212 = pneg %p84
        $region18: #{tpu_custom_call.1} parent=11 // pred_check_branch
          %214 = sbr.rel (%p212) target = $region20
        $region19: #{tpu_custom_call.1} parent=11 // pred_region
          _
        $region20: #{tpu_custom_call.1} parent=11 // pred_fallthru
          _
        // Predicated region
        $region21: #{tpu_custom_call.1} parent=11 // pred_check
          %p215 = pneg %p105
        $region22: #{tpu_custom_call.1} parent=11 // pred_check_branch
          %217 = sbr.rel (%p215) target = $region24
        $region23: #{tpu_custom_call.1} parent=11 // pred_region
          _
        $region24: #{tpu_custom_call.1} parent=11 // pred_fallthru
          _
        // Predicated region
        $region25: #{tpu_custom_call.1} parent=11 // pred_check
          %p218 = pneg %p126
        $region26: #{tpu_custom_call.1} parent=11 // pred_check_branch
          %220 = sbr.rel (%p218) target = $region28
        $region27: #{tpu_custom_call.1} parent=11 // pred_region
          _
        $region28: #{tpu_custom_call.1} parent=11 // pred_fallthru
          _
        // Predicated region
        $region29: #{tpu_custom_call.1} parent=11 // pred_check
          %p221 = pneg %p147
        $region30: #{tpu_custom_call.1} parent=11 // pred_check_branch
          %223 = sbr.rel (%p221) target = $region32
        $region31: #{tpu_custom_call.1} parent=11 // pred_region
          _
        $region32: #{tpu_custom_call.1} parent=11 // pred_fallthru
          _
        // Predicated region
        $region33: #{tpu_custom_call.1} parent=11 // pred_check
          %p224 = pneg %p168
        $region34: #{tpu_custom_call.1} parent=11 // pred_check_branch
          %226 = sbr.rel (%p224) target = $region36
        $region35: #{tpu_custom_call.1} parent=11 // pred_region
          _
        $region36: #{tpu_custom_call.1} parent=11 // pred_fallthru
          _
      $region12: #{tpu_custom_call.1} parent=5 // pred_fallthru
        _
      %p227 = scmp.lt.s32.totalorder %s16, 2
      // Predicated region
      $region37: #{tpu_custom_call.1} parent=5 // pred_check
        %p228 = pneg %p227
      $region38: #{tpu_custom_call.1} parent=5 // pred_check_branch
        %230 = sbr.rel (%p228) target = $region40
      $region39: #{tpu_custom_call.1} parent=5 // pred_region
        // Predicated region
        $region41: #{tpu_custom_call.1} parent=39 // pred_check
          %p231 = pneg %p36
        $region42: #{tpu_custom_call.1} parent=39 // pred_check_branch
          %233 = sbr.rel (%p231) target = $region44
        $region43: #{tpu_custom_call.1} parent=39 // pred_region
          %s234 = smul.u32 2, %s16
          %p235 = scmp.lt.s32.totalorder %s234, 3
          %s236 = scalar_select %p235, %s234, 3
          %s237 = smul.addr %s236, 2
          %s238 = smul.addr %s237, 8
          %s239 = scalar_lea.vmem %s0, %s238
          %s240 = smul.u32 2, %s16
        $region44: #{tpu_custom_call.1} parent=39 // pred_fallthru
          _
      $region40: #{tpu_custom_call.1} parent=5 // pred_fallthru
        _
      %p241 = scmp.le.s32.totalorder 1, %s16
      %p242 = scmp.lt.s32.totalorder %s16, 3
      %p243 = pnand %p241, %p242
      %p244 = pneg %p243
      // Predicated region
      $region45: #{tpu_custom_call.1} parent=5 // pred_check
        _
      $region46: #{tpu_custom_call.1} parent=5 // pred_check_branch
        %246 = sbr.rel (%p243) target = $region48
      $region47: #{tpu_custom_call.1} parent=5 // pred_region
        %s247 = ssub.s32 %s16, 1
        %s248 = smul.u32 2, %s21
        %p249 = scmp.lt.s32.totalorder %s248, 3
        %s250 = scalar_select %p249, %s248, 3
        %s251 = smul.addr %s250, 2
        %s252 = smul.addr %s251, 8
        %s253 = scalar_lea.vmem %s0, %s252
        %p254 = pneg %p42
        %p255 = pneg %p39
        %p256 = pneg %p63
        %p257 = pneg %p60
        %p258 = pneg %p84
        %p259 = pneg %p81
        %p260 = pneg %p105
        %p261 = pneg %p102
        %p262 = pneg %p126
        %p263 = pneg %p123
        %p264 = pneg %p147
        %p265 = pneg %p144
        %p266 = pneg %p168
        %p267 = pneg %p165
        %p268 = pneg %p194
        %p269 = pneg %p191
        %s270 = sand.u32 %s181, 1
        %s271 = scalar_lea.sflag [#allocation4], %s270
        %s272 = sand.u32 %s181, 1
        %s273 = smul.addr %s272, 32
        %s274 = scalar_lea.vmem [#allocation3], %s273
        %s275 = smul.u32 2, %s21
        %p276 = scmp.lt.s32.totalorder %s275, 3
        %s277 = scalar_select %p276, %s275, 3
        %s278 = smul.addr %s277, 2
        %s279 = smul.addr %s278, 8
        %s280 = scalar_lea.vmem %s0, %s279
        %s281 = smul.u32 2, %s21
        %s282 = smul.u32 2, %s21
        %v284 = vld [vmem:[%s280] sm:$0xff]
        %v285 = vld [vmem:[%s280 + $0x8] sm:$0xff]
        %v286 = vld [vmem:[%s280 + $0x10] sm:$0xff]
        %v287 = vld [vmem:[%s280 + $0x18] sm:$0xff]
        %v288 = vld [vmem:[%s1] sm:$0x1]
        %v290 = vlaneseq
        %v291 = vshrl.u32 %v290, 7
        %v292 = vsub.s32 0, %v291
        %v293 = vrot.slane %v288, %v292
        %v295 = vmul.f32 %v284, %v293
        %v296 = vmul.f32 %v285, %v293
        %v297 = vmul.f32 %v286, %v293
        %v298 = vmul.f32 %v287, %v293
        %v299 = vld [vmem:[%s2] sm:$0x1]
        %v301 = vlaneseq
        %v302 = vshrl.u32 %v301, 7
        %v303 = vsub.s32 0, %v302
        %v304 = vrot.slane %v299, %v303
        %v306 = vadd.f32 %v295, %v304
        %v307 = vadd.f32 %v296, %v304
        %v308 = vadd.f32 %v297, %v304
        %v309 = vadd.f32 %v298, %v304
        %v310 = vmax.f32 %v306, 0.0
        %v311 = vmax.f32 %v307, 0.0
        %v312 = vmax.f32 %v308, 0.0
        %v313 = vmax.f32 %v309, 0.0
        %v314 = vpack.c.bf16 %v311, %v310
        %v315 = vpack.c.bf16 %v313, %v312
        %v316 = vld [vmem:[%s3] sm:$0xf]
        %v317 = vld [vmem:[%s3 + $0x4] sm:$0xf]
        %v320 = vunpack.c.l.b16 %v316
        %v321 = vunpack.c.l.b16 %v317
        %v322 = vpack.c.b16 %v321, %v320
        %vm324 = vcmask 130048
        %v326 = vsel %vm324, %v314, 0
        %v329 = vsel %vm324, %v315, 0
        %331 = vmatprep.subr.bf16.mxu0 0
        %332 = vmatpush1.bf16.msra.mxu0 %v322
        %333 = vmatprep.subr.bf16.mxu0 0
        %334 = vmatpush1.bf16.msra.mxu0 0
        %335 = vmatprep.subr.bf16.mxu0 0
        %336 = vmatpush1.bf16.msra.mxu0 0
        %337 = vmatprep.subr.bf16.mxu0 0
        %338 = vmatpush1.bf16.msra.mxu0 0
        %339 = vmatprep.subr.bf16.mxu0 0
        %340 = vmatpush1.bf16.msra.mxu0 0
        %341 = vmatprep.subr.bf16.mxu0 0
        %342 = vmatpush1.bf16.msra.mxu0 0
        %343 = vmatprep.subr.bf16.mxu0 0
        %344 = vmatpush1.bf16.msra.mxu0 0
        %345 = vmatprep.subr.bf16.mxu0 0
        %346 = vmatpush1.bf16.msra.mxu0 0
        %347 = vmatprep.subr.bf16.mxu0 0
        %348 = vmatpush1.bf16.msra.mxu0 0
        %349 = vmatprep.subr.bf16.mxu0 0
        %350 = vmatpush1.bf16.msra.mxu0 0
        %351 = vmatprep.subr.bf16.mxu0 0
        %352 = vmatpush1.bf16.msra.mxu0 0
        %353 = vmatprep.subr.bf16.mxu0 0
        %354 = vmatpush1.bf16.msra.mxu0 0
        %355 = vmatprep.subr.bf16.mxu0 0
        %356 = vmatpush1.bf16.msra.mxu0 0
        %357 = vmatprep.subr.bf16.mxu0 0
        %358 = vmatpush1.bf16.msra.mxu0 0
        %359 = vmatprep.subr.bf16.mxu0 0
        %360 = vmatpush1.bf16.msra.mxu0 0
        %361 = vmatprep.subr.bf16.mxu0 0
        %362 = vmatpush1.bf16.msra.mxu0 0
        %363 = vmatprep.mubr.bf16.mxu0 0
        %364 = vmatmul.mubr.bf16.gmra.mrb[0].mxu0 %v326
        %v365 = vpop.f32.mrb[0].mxu0
        %v366 = vadd.f32 0.0, %v365
        %v367 = vpop.f32.mrb[0].mxu0
        %v368 = vpop.f32.mrb[0].mxu0
        %v369 = vadd.f32 0.0, %v368
        %v370 = vpop.f32.mrb[0].mxu0
        %371 = vmatprep.mubr.bf16.mxu0 0
        %372 = vmatmul.mubr.bf16.gmra.mrb[0].mxu0 %v329
        %v373 = vpop.f32.mrb[0].mxu0
        %v374 = vadd.f32 0.0, %v373
        %v375 = vpop.f32.mrb[0].mxu0
        %v376 = vpop.f32.mrb[0].mxu0
        %v377 = vadd.f32 0.0, %v376
        %v378 = vpop.f32.mrb[0].mxu0
        %379 = vdwg.mxu0
        %v380 = vld [vmem:[%s4] sm:$0x1]
        %v382 = vlaneseq
        %v383 = vshrl.u32 %v382, 7
        %v384 = vsub.s32 0, %v383
        %v385 = vrot.slane %v380, %v384
        %v387 = vmul.f32 %v366, %v385
        %v388 = vmul.f32 %v369, %v385
        %v389 = vmul.f32 %v374, %v385
        %v390 = vmul.f32 %v377, %v385
        %v391 = vld [vmem:[%s5] sm:$0x1]
        %v393 = vlaneseq
        %v394 = vshrl.u32 %v393, 7
        %v395 = vsub.s32 0, %v394
        %v396 = vrot.slane %v391, %v395
        %v398 = vadd.f32 %v387, %v396
        %v399 = vadd.f32 %v388, %v396
        %v400 = vadd.f32 %v389, %v396
        %v401 = vadd.f32 %v390, %v396
        %v402 = vmax.f32 %v398, 0.0
        %v403 = vmax.f32 %v399, 0.0
        %v404 = vmax.f32 %v400, 0.0
        %v405 = vmax.f32 %v401, 0.0
        %v406 = vrot.slane %v402, 5
        %v407 = vrot.slane %v403, 5
        %v408 = vrot.slane %v404, 5
        %v409 = vrot.slane %v405, 5
        %v410 = vlaneseq
        %v411 = vshrl.u32 %v410, 7
        %vm412 = vcmp.lt.s32.totalorder %v411, 3
        %v413 = vsel %vm412, %v409, 0.0
        %v414 = vsel %vm412, %v408, %v409
        %v415 = vsel %vm412, 0.0, %v408
        %v416 = vsel %vm412, %v407, 0.0
        %v417 = vsel %vm412, %v406, %v407
        %v418 = vsel %vm412, 0.0, %v406
        %v419 = vpack.c.bf16 %v418, 0.0
        %v420 = vpack.c.bf16 %v416, %v417
        %v421 = vpack.c.bf16 %v414, %v415
        %v422 = vpack.c.bf16 %v413, %v413
        %v427 = vunpack.c.l.b16 %v419
        %v428 = vunpack.c.h.b16 %v419
        %v429 = vunpack.c.l.b16 %v420
        %v430 = vunpack.c.h.b16 %v420
        %v431 = vunpack.c.l.b16 %v421
        %v432 = vunpack.c.h.b16 %v421
        %v433 = vunpack.c.l.b16 %v422
        %v434 = vpack.c.b16 %v427, %v427
        %v435 = vpack.c.b16 %v428, %v428
        %v436 = vpack.c.b16 %v429, %v429
        %v437 = vpack.c.b16 %v430, %v430
        %v438 = vpack.c.b16 %v431, %v431
        %v439 = vpack.c.b16 %v432, %v432
        %v440 = vpack.c.b16 %v433, %v433
        %vm448 = vcmask 257024
        %449 = vst.msk [vmem:[#allocation2] sm:$0xf] %vm448, %v434
        %450 = vst.msk [vmem:[#allocation2 + $0x8] sm:$0xf] %vm448, %v435
        %451 = vst.msk [vmem:[#allocation2 + $0x10] sm:$0xf] %vm448, %v436
        %452 = vst.msk [vmem:[#allocation2 + $0x18] sm:$0xf] %vm448, %v437
        %453 = vst.msk [vmem:[#allocation2 + $0x20] sm:$0xf] %vm448, %v438
        %454 = vst.msk [vmem:[#allocation2 + $0x28] sm:$0xf] %vm448, %v439
        %455 = vst.msk [vmem:[#allocation2 + $0x30] sm:$0xf] %vm448, %v440
        %v456 = vrot.slane %v402, 6
        %v457 = vrot.slane %v403, 6
        %v458 = vrot.slane %v404, 6
        %v459 = vrot.slane %v405, 6
        %vm460 = vcmp.lt.s32.totalorder %v411, 2
        %v461 = vsel %vm460, %v459, 0.0
        %v462 = vsel %vm460, %v458, %v459
        %v463 = vsel %vm460, 0.0, %v458
        %v464 = vsel %vm460, %v457, 0.0
        %v465 = vsel %vm460, %v456, %v457
        %v466 = vsel %vm460, 0.0, %v456
        %v467 = vpack.c.bf16 %v466, 0.0
        %v468 = vpack.c.bf16 %v464, %v465
        %v469 = vpack.c.bf16 %v462, %v463
        %v470 = vpack.c.bf16 %v461, %v461
        %v475 = vunpack.c.l.b16 %v467
        %v476 = vunpack.c.h.b16 %v467
        %v477 = vunpack.c.l.b16 %v468
        %v478 = vunpack.c.h.b16 %v468
        %v479 = vunpack.c.l.b16 %v469
        %v480 = vunpack.c.h.b16 %v469
        %v481 = vunpack.c.l.b16 %v470
        %v482 = vpack.c.b16 %v475, %v475
        %v483 = vpack.c.b16 %v476, %v476
        %v484 = vpack.c.b16 %v477, %v477
        %v485 = vpack.c.b16 %v478, %v478
        %v486 = vpack.c.b16 %v479, %v479
        %v487 = vpack.c.b16 %v480, %v480
        %v488 = vpack.c.b16 %v481, %v481
        %489 = vrot.lane.b32.xlu0 %v482, 32
        %v490 = vpop.permute.xlu0 %489
        %491 = vrot.lane.b32.xlu0 %v483, 32
        %v492 = vpop.permute.xlu0 %491
        %493 = vrot.lane.b32.xlu0 %v484, 32
        %v494 = vpop.permute.xlu0 %493
        %495 = vrot.lane.b32.xlu0 %v485, 32
        %v496 = vpop.permute.xlu0 %495
        %497 = vrot.lane.b32.xlu0 %v486, 32
        %v498 = vpop.permute.xlu0 %497
        %499 = vrot.lane.b32.xlu0 %v487, 32
        %v500 = vpop.permute.xlu0 %499
        %501 = vrot.lane.b32.xlu0 %v488, 32
        %v502 = vpop.permute.xlu0 %501
        %vm510 = vcmask 519424
        %511 = vst.msk [vmem:[#allocation2] sm:$0xf] %vm510, %v490
        %512 = vst.msk [vmem:[#allocation2 + $0x8] sm:$0xf] %vm510, %v492
        %513 = vst.msk [vmem:[#allocation2 + $0x10] sm:$0xf] %vm510, %v494
        %514 = vst.msk [vmem:[#allocation2 + $0x18] sm:$0xf] %vm510, %v496
        %515 = vst.msk [vmem:[#allocation2 + $0x20] sm:$0xf] %vm510, %v498
        %516 = vst.msk [vmem:[#allocation2 + $0x28] sm:$0xf] %vm510, %v500
        %517 = vst.msk [vmem:[#allocation2 + $0x30] sm:$0xf] %vm510, %v502
        %v518 = vrot.slane %v402, 7
        %v519 = vrot.slane %v403, 7
        %v520 = vrot.slane %v404, 7
        %v521 = vrot.slane %v405, 7
        %vm522 = vcmp.lt.s32.totalorder %v411, 1
        %v523 = vsel %vm522, %v521, 0.0
        %v524 = vsel %vm522, %v520, %v521
        %v525 = vsel %vm522, 0.0, %v520
        %v526 = vsel %vm522, %v519, 0.0
        %v527 = vsel %vm522, %v518, %v519
        %v528 = vsel %vm522, 0.0, %v518
        %v529 = vpack.c.bf16 %v528, 0.0
        %v530 = vpack.c.bf16 %v526, %v527
        %v531 = vpack.c.bf16 %v524, %v525
        %v532 = vpack.c.bf16 %v523, %v523
        %v537 = vunpack.c.l.b16 %v529
        %v538 = vunpack.c.h.b16 %v529
        %v539 = vunpack.c.l.b16 %v530
        %v540 = vunpack.c.h.b16 %v530
        %v541 = vunpack.c.l.b16 %v531
        %v542 = vunpack.c.h.b16 %v531
        %v543 = vunpack.c.l.b16 %v532
        %v544 = vpack.c.b16 %v537, %v537
        %v545 = vpack.c.b16 %v538, %v538
        %v546 = vpack.c.b16 %v539, %v539
        %v547 = vpack.c.b16 %v540, %v540
        %v548 = vpack.c.b16 %v541, %v541
        %v549 = vpack.c.b16 %v542, %v542
        %v550 = vpack.c.b16 %v543, %v543
        %551 = vrot.lane.b32.xlu0 %v544, 64
        %v552 = vpop.permute.xlu0 %551
        %553 = vrot.lane.b32.xlu0 %v545, 64
        %v554 = vpop.permute.xlu0 %553
        %555 = vrot.lane.b32.xlu0 %v546, 64
        %v556 = vpop.permute.xlu0 %555
        %557 = vrot.lane.b32.xlu0 %v547, 64
        %v558 = vpop.permute.xlu0 %557
        %559 = vrot.lane.b32.xlu0 %v548, 64
        %v560 = vpop.permute.xlu0 %559
        %561 = vrot.lane.b32.xlu0 %v549, 64
        %v562 = vpop.permute.xlu0 %561
        %563 = vrot.lane.b32.xlu0 %v550, 64
        %v564 = vpop.permute.xlu0 %563
        %vm572 = vcmask 781824
        %573 = vst.msk [vmem:[#allocation2] sm:$0xf] %vm572, %v552
        %574 = vst.msk [vmem:[#allocation2 + $0x8] sm:$0xf] %vm572, %v554
        %575 = vst.msk [vmem:[#allocation2 + $0x10] sm:$0xf] %vm572, %v556
        %576 = vst.msk [vmem:[#allocation2 + $0x18] sm:$0xf] %vm572, %v558
        %577 = vst.msk [vmem:[#allocation2 + $0x20] sm:$0xf] %vm572, %v560
        %578 = vst.msk [vmem:[#allocation2 + $0x28] sm:$0xf] %vm572, %v562
        %579 = vst.msk [vmem:[#allocation2 + $0x30] sm:$0xf] %vm572, %v564
        %v580 = vpack.c.bf16 %v402, 0.0
        %v581 = vpack.c.bf16 0.0, %v403
        %v582 = vpack.c.bf16 %v405, %v404
        %v583 = vpack.c.bf16 0.0, 0.0
        %v588 = vunpack.c.l.b16 %v580
        %v589 = vunpack.c.h.b16 %v580
        %v590 = vunpack.c.l.b16 %v581
        %v591 = vunpack.c.h.b16 %v581
        %v592 = vunpack.c.l.b16 %v582
        %v593 = vunpack.c.h.b16 %v582
        %v594 = vunpack.c.l.b16 %v583
        %v595 = vpack.c.b16 %v588, %v588
        %v596 = vpack.c.b16 %v589, %v589
        %v597 = vpack.c.b16 %v590, %v590
        %v598 = vpack.c.b16 %v591, %v591
        %v599 = vpack.c.b16 %v592, %v592
        %v600 = vpack.c.b16 %v593, %v593
        %v601 = vpack.c.b16 %v594, %v594
        %602 = vrot.lane.b32.xlu0 %v595, 96
        %v603 = vpop.permute.xlu0 %602
        %604 = vrot.lane.b32.xlu0 %v596, 96
        %v605 = vpop.permute.xlu0 %604
        %606 = vrot.lane.b32.xlu0 %v597, 96
        %v607 = vpop.permute.xlu0 %606
        %608 = vrot.lane.b32.xlu0 %v598, 96
        %v609 = vpop.permute.xlu0 %608
        %610 = vrot.lane.b32.xlu0 %v599, 96
        %v611 = vpop.permute.xlu0 %610
        %612 = vrot.lane.b32.xlu0 %v600, 96
        %v613 = vpop.permute.xlu0 %612
        %614 = vrot.lane.b32.xlu0 %v601, 96
        %v615 = vpop.permute.xlu0 %614
        %vm623 = vcmask 1044224
        %624 = vst.msk [vmem:[#allocation2] sm:$0xf] %vm623, %v603
        %625 = vst.msk [vmem:[#allocation2 + $0x8] sm:$0xf] %vm623, %v605
        %626 = vst.msk [vmem:[#allocation2 + $0x10] sm:$0xf] %vm623, %v607
        %627 = vst.msk [vmem:[#allocation2 + $0x18] sm:$0xf] %vm623, %v609
        %628 = vst.msk [vmem:[#allocation2 + $0x20] sm:$0xf] %vm623, %v611
        %629 = vst.msk [vmem:[#allocation2 + $0x28] sm:$0xf] %vm623, %v613
        %630 = vst.msk [vmem:[#allocation2 + $0x30] sm:$0xf] %vm623, %v615
        %v631 = vrot.slane %v402, 1
        %v632 = vrot.slane %v403, 1
        %v633 = vrot.slane %v404, 1
        %v634 = vrot.slane %v405, 1
        %vm635 = vcmp.lt.s32.totalorder %v411, 7
        %v636 = vsel %vm635, %v634, 0.0
        %v637 = vsel %vm635, %v633, %v634
        %v638 = vsel %vm635, 0.0, %v633
        %v639 = vsel %vm635, %v632, 0.0
        %v640 = vsel %vm635, %v631, %v632
        %v641 = vsel %vm635, 0.0, %v631
        %v642 = vpack.c.bf16 %v640, %v641
        %v643 = vpack.c.bf16 %v638, %v639
        %v644 = vpack.c.bf16 %v636, %v637
        %v645 = vpack.c.bf16 0.0, 0.0
        %v650 = vunpack.c.l.b16 %v642
        %v651 = vunpack.c.h.b16 %v642
        %v652 = vunpack.c.l.b16 %v643
        %v653 = vunpack.c.h.b16 %v643
        %v654 = vunpack.c.l.b16 %v644
        %v655 = vunpack.c.h.b16 %v644
        %v656 = vunpack.c.l.b16 %v645
        %v657 = vpack.c.b16 %v650, %v650
        %v658 = vpack.c.b16 %v651, %v651
        %v659 = vpack.c.b16 %v652, %v652
        %v660 = vpack.c.b16 %v653, %v653
        %v661 = vpack.c.b16 %v654, %v654
        %v662 = vpack.c.b16 %v655, %v655
        %v663 = vpack.c.b16 %v656, %v656
        %671 = vst.msk [vmem:[#allocation2 + $0x4] sm:$0xf] %vm448, %v657
        %672 = vst.msk [vmem:[#allocation2 + $0xc] sm:$0xf] %vm448, %v658
        %673 = vst.msk [vmem:[#allocation2 + $0x14] sm:$0xf] %vm448, %v659
        %674 = vst.msk [vmem:[#allocation2 + $0x1c] sm:$0xf] %vm448, %v660
        %675 = vst.msk [vmem:[#allocation2 + $0x24] sm:$0xf] %vm448, %v661
        %676 = vst.msk [vmem:[#allocation2 + $0x2c] sm:$0xf] %vm448, %v662
        %677 = vst.msk [vmem:[#allocation2 + $0x34] sm:$0xf] %vm448, %v663
        %v678 = vrot.slane %v402, 2
        %v679 = vrot.slane %v403, 2
        %v680 = vrot.slane %v404, 2
        %v681 = vrot.slane %v405, 2
        %vm682 = vcmp.lt.s32.totalorder %v411, 6
        %v683 = vsel %vm682, %v681, 0.0
        %v684 = vsel %vm682, %v680, %v681
        %v685 = vsel %vm682, 0.0, %v680
        %v686 = vsel %vm682, %v679, 0.0
        %v687 = vsel %vm682, %v678, %v679
        %v688 = vsel %vm682, 0.0, %v678
        %v689 = vpack.c.bf16 %v687, %v688
        %v690 = vpack.c.bf16 %v685, %v686
        %v691 = vpack.c.bf16 %v683, %v684
        %v692 = vpack.c.bf16 0.0, 0.0
        %v697 = vunpack.c.l.b16 %v689
        %v698 = vunpack.c.h.b16 %v689
        %v699 = vunpack.c.l.b16 %v690
        %v700 = vunpack.c.h.b16 %v690
        %v701 = vunpack.c.l.b16 %v691
        %v702 = vunpack.c.h.b16 %v691
        %v703 = vunpack.c.l.b16 %v692
        %v704 = vpack.c.b16 %v697, %v697
        %v705 = vpack.c.b16 %v698, %v698
        %v706 = vpack.c.b16 %v699, %v699
        %v707 = vpack.c.b16 %v700, %v700
        %v708 = vpack.c.b16 %v701, %v701
        %v709 = vpack.c.b16 %v702, %v702
        %v710 = vpack.c.b16 %v703, %v703
        %711 = vrot.lane.b32.xlu0 %v704, 32
        %v712 = vpop.permute.xlu0 %711
        %713 = vrot.lane.b32.xlu0 %v705, 32
        %v714 = vpop.permute.xlu0 %713
        %715 = vrot.lane.b32.xlu0 %v706, 32
        %v716 = vpop.permute.xlu0 %715
        %717 = vrot.lane.b32.xlu0 %v707, 32
        %v718 = vpop.permute.xlu0 %717
        %719 = vrot.lane.b32.xlu0 %v708, 32
        %v720 = vpop.permute.xlu0 %719
        %721 = vrot.lane.b32.xlu0 %v709, 32
        %v722 = vpop.permute.xlu0 %721
        %723 = vrot.lane.b32.xlu0 %v710, 32
        %v724 = vpop.permute.xlu0 %723
        %732 = vst.msk [vmem:[#allocation2 + $0x4] sm:$0xf] %vm510, %v712
        %733 = vst.msk [vmem:[#allocation2 + $0xc] sm:$0xf] %vm510, %v714
        %734 = vst.msk [vmem:[#allocation2 + $0x14] sm:$0xf] %vm510, %v716
        %735 = vst.msk [vmem:[#allocation2 + $0x1c] sm:$0xf] %vm510, %v718
        %736 = vst.msk [vmem:[#allocation2 + $0x24] sm:$0xf] %vm510, %v720
        %737 = vst.msk [vmem:[#allocation2 + $0x2c] sm:$0xf] %vm510, %v722
        %738 = vst.msk [vmem:[#allocation2 + $0x34] sm:$0xf] %vm510, %v724
        %v739 = vrot.slane %v402, 3
        %v740 = vrot.slane %v403, 3
        %v741 = vrot.slane %v404, 3
        %v742 = vrot.slane %v405, 3
        %vm743 = vcmp.lt.s32.totalorder %v411, 5
        %v744 = vsel %vm743, %v742, 0.0
        %v745 = vsel %vm743, %v741, %v742
        %v746 = vsel %vm743, 0.0, %v741
        %v747 = vsel %vm743, %v740, 0.0
        %v748 = vsel %vm743, %v739, %v740
        %v749 = vsel %vm743, 0.0, %v739
        %v750 = vpack.c.bf16 %v748, %v749
        %v751 = vpack.c.bf16 %v746, %v747
        %v752 = vpack.c.bf16 %v744, %v745
        %v753 = vpack.c.bf16 0.0, 0.0
        %v758 = vunpack.c.l.b16 %v750
        %v759 = vunpack.c.h.b16 %v750
        %v760 = vunpack.c.l.b16 %v751
        %v761 = vunpack.c.h.b16 %v751
        %v762 = vunpack.c.l.b16 %v752
        %v763 = vunpack.c.h.b16 %v752
        %v764 = vunpack.c.l.b16 %v753
        %v765 = vpack.c.b16 %v758, %v758
        %v766 = vpack.c.b16 %v759, %v759
        %v767 = vpack.c.b16 %v760, %v760
        %v768 = vpack.c.b16 %v761, %v761
        %v769 = vpack.c.b16 %v762, %v762
        %v770 = vpack.c.b16 %v763, %v763
        %v771 = vpack.c.b16 %v764, %v764
        %772 = vrot.lane.b32.xlu0 %v765, 64
        %v773 = vpop.permute.xlu0 %772
        %774 = vrot.lane.b32.xlu0 %v766, 64
        %v775 = vpop.permute.xlu0 %774
        %776 = vrot.lane.b32.xlu0 %v767, 64
        %v777 = vpop.permute.xlu0 %776
        %778 = vrot.lane.b32.xlu0 %v768, 64
        %v779 = vpop.permute.xlu0 %778
        %780 = vrot.lane.b32.xlu0 %v769, 64
        %v781 = vpop.permute.xlu0 %780
        %782 = vrot.lane.b32.xlu0 %v770, 64
        %v783 = vpop.permute.xlu0 %782
        %784 = vrot.lane.b32.xlu0 %v771, 64
        %v785 = vpop.permute.xlu0 %784
        %793 = vst.msk [vmem:[#allocation2 + $0x4] sm:$0xf] %vm572, %v773
        %794 = vst.msk [vmem:[#allocation2 + $0xc] sm:$0xf] %vm572, %v775
        %795 = vst.msk [vmem:[#allocation2 + $0x14] sm:$0xf] %vm572, %v777
        %796 = vst.msk [vmem:[#allocation2 + $0x1c] sm:$0xf] %vm572, %v779
        %797 = vst.msk [vmem:[#allocation2 + $0x24] sm:$0xf] %vm572, %v781
        %798 = vst.msk [vmem:[#allocation2 + $0x2c] sm:$0xf] %vm572, %v783
        %799 = vst.msk [vmem:[#allocation2 + $0x34] sm:$0xf] %vm572, %v785
        %v800 = vld [vmem:[#allocation2] sm:$0xff]
        %v801 = vld [vmem:[#allocation2 + $0x8] sm:$0xff]
        %v802 = vld [vmem:[#allocation2 + $0x10] sm:$0xff]
        %v803 = vld [vmem:[#allocation2 + $0x18] sm:$0xff]
        %v804 = vld [vmem:[#allocation2 + $0x20] sm:$0xff]
        %v805 = vld [vmem:[#allocation2 + $0x28] sm:$0xff]
        %v806 = vld [vmem:[#allocation2 + $0x30] sm:$0xff]
        %v807 = vld [vmem:[%s6] sm:$0xf]
        %v808 = vld [vmem:[%s6 + $0x4] sm:$0xf]
        %v809 = vld [vmem:[%s6 + $0x8] sm:$0xf]
        %v810 = vld [vmem:[%s6 + $0xc] sm:$0xf]
        %v811 = vld [vmem:[%s6 + $0x10] sm:$0xf]
        %v812 = vld [vmem:[%s6 + $0x14] sm:$0xf]
        %v813 = vld [vmem:[%s6 + $0x18] sm:$0xf]
        %v814 = vld [vmem:[%s6 + $0x1c] sm:$0xf]
        %v815 = vld [vmem:[%s6 + $0x20] sm:$0xf]
        %v816 = vld [vmem:[%s6 + $0x24] sm:$0xf]
        %v817 = vld [vmem:[%s6 + $0x28] sm:$0xf]
        %v818 = vld [vmem:[%s6 + $0x2c] sm:$0xf]
        %v819 = vld [vmem:[%s6 + $0x30] sm:$0xf]
        %v820 = vld [vmem:[%s6 + $0x34] sm:$0xf]
        %v821 = vld [vmem:[%s6 + $0x38] sm:$0xf]
        %v822 = vld [vmem:[%s6 + $0x3c] sm:$0xf]
        %v823 = vld [vmem:[%s6 + $0x40] sm:$0xf]
        %v824 = vld [vmem:[%s6 + $0x44] sm:$0xf]
        %v825 = vld [vmem:[%s6 + $0x48] sm:$0xf]
        %v826 = vld [vmem:[%s6 + $0x4c] sm:$0xf]
        %v827 = vld [vmem:[%s6 + $0x50] sm:$0xf]
        %v828 = vld [vmem:[%s6 + $0x54] sm:$0xf]
        %v829 = vld [vmem:[%s6 + $0x58] sm:$0xf]
        %v830 = vld [vmem:[%s6 + $0x5c] sm:$0xf]
        %v831 = vld [vmem:[%s6 + $0x60] sm:$0xf]
        %v832 = vld [vmem:[%s6 + $0x64] sm:$0xf]
        %v833 = vld [vmem:[%s6 + $0x68] sm:$0xf]
        %v834 = vld [vmem:[%s6 + $0x6c] sm:$0xf]
        %v842 = vunpack.c.l.b16 %v800
        %v843 = vunpack.c.h.b16 %v800
        %v844 = vunpack.c.l.b16 %v801
        %v845 = vunpack.c.h.b16 %v801
        %v846 = vunpack.c.l.b16 %v802
        %v847 = vunpack.c.h.b16 %v802
        %v848 = vunpack.c.l.b16 %v803
        %v849 = vunpack.c.h.b16 %v803
        %v850 = vunpack.c.l.b16 %v804
        %v851 = vunpack.c.h.b16 %v804
        %v852 = vunpack.c.l.b16 %v805
        %v853 = vunpack.c.h.b16 %v805
        %v854 = vunpack.c.l.b16 %v806
        %v855 = vunpack.c.h.b16 %v806
        %v856 = vpack.c.b16 %v844, %v842
        %v857 = vpack.c.b16 %v845, %v843
        %v858 = vpack.c.b16 %v848, %v846
        %v859 = vpack.c.b16 %v849, %v847
        %v860 = vpack.c.b16 %v852, %v850
        %v861 = vpack.c.b16 %v853, %v851
        %v862 = vpack.c.b16 %v854, %v854
        %v863 = vpack.c.b16 %v855, %v855
        %v896 = vunpack.c.l.b16 %v807
        %v897 = vunpack.c.l.b16 %v808
        %v898 = vunpack.c.l.b16 %v809
        %v899 = vunpack.c.l.b16 %v810
        %v900 = vunpack.c.l.b16 %v811
        %v901 = vunpack.c.l.b16 %v812
        %v902 = vunpack.c.l.b16 %v813
        %v903 = vunpack.c.l.b16 %v814
        %v904 = vunpack.c.l.b16 %v815
        %v905 = vunpack.c.l.b16 %v816
        %v906 = vunpack.c.l.b16 %v817
        %v907 = vunpack.c.l.b16 %v818
        %v908 = vunpack.c.l.b16 %v819
        %v909 = vunpack.c.l.b16 %v820
        %v910 = vunpack.c.l.b16 %v821
        %v911 = vunpack.c.l.b16 %v822
        %v912 = vunpack.c.l.b16 %v823
        %v913 = vunpack.c.l.b16 %v824
        %v914 = vunpack.c.l.b16 %v825
        %v915 = vunpack.c.l.b16 %v826
        %v916 = vunpack.c.l.b16 %v827
        %v917 = vunpack.c.l.b16 %v828
        %v918 = vunpack.c.l.b16 %v829
        %v919 = vunpack.c.l.b16 %v830
        %v920 = vunpack.c.l.b16 %v831
        %v921 = vunpack.c.l.b16 %v832
        %v922 = vunpack.c.l.b16 %v833
        %v923 = vunpack.c.l.b16 %v834
        %v924 = vpack.c.b16 %v897, %v896
        %v925 = vpack.c.b16 %v899, %v898
        %v926 = vpack.c.b16 %v901, %v900
        %v927 = vpack.c.b16 %v903, %v902
        %v928 = vpack.c.b16 %v905, %v904
        %v929 = vpack.c.b16 %v907, %v906
        %v930 = vpack.c.b16 %v909, %v908
        %v931 = vpack.c.b16 %v911, %v910
        %v932 = vpack.c.b16 %v913, %v912
        %v933 = vpack.c.b16 %v915, %v914
        %v934 = vpack.c.b16 %v917, %v916
        %v935 = vpack.c.b16 %v919, %v918
        %v936 = vpack.c.b16 %v921, %v920
        %v937 = vpack.c.b16 %v923, %v922
        %vm952 = vcmask 785408
        %v954 = vsel %vm952, %v857, 0
        %v957 = vsel %vm952, %v859, 0
        %v960 = vsel %vm952, %v861, 0
        %v963 = vsel %vm952, %v863, 0
        %965 = vmatprep.subr.bf16.mxu0 0
        %966 = vmatpush1.bf16.msra.mxu0 %v924
        %967 = vmatprep.subr.bf16.mxu0 0
        %968 = vmatpush1.bf16.msra.mxu0 %v925
        %969 = vmatprep.subr.bf16.mxu0 0
        %970 = vmatpush1.bf16.msra.mxu0 %v926
        %971 = vmatprep.subr.bf16.mxu0 0
        %972 = vmatpush1.bf16.msra.mxu0 %v927
        %973 = vmatprep.subr.bf16.mxu0 0
        %974 = vmatpush1.bf16.msra.mxu0 %v928
        %975 = vmatprep.subr.bf16.mxu0 0
        %976 = vmatpush1.bf16.msra.mxu0 %v929
        %977 = vmatprep.subr.bf16.mxu0 0
        %978 = vmatpush1.bf16.msra.mxu0 %v930
        %979 = vmatprep.subr.bf16.mxu0 0
        %980 = vmatpush1.bf16.msra.mxu0 %v931
        %981 = vmatprep.subr.bf16.mxu0 0
        %982 = vmatpush1.bf16.msra.mxu0 %v932
        %983 = vmatprep.subr.bf16.mxu0 0
        %984 = vmatpush1.bf16.msra.mxu0 %v933
        %985 = vmatprep.subr.bf16.mxu0 0
        %986 = vmatpush1.bf16.msra.mxu0 %v934
        %987 = vmatprep.subr.bf16.mxu0 0
        %988 = vmatpush1.bf16.msra.mxu0 %v935
        %989 = vmatprep.subr.bf16.mxu0 0
        %990 = vmatpush1.bf16.msra.mxu0 %v936
        %991 = vmatprep.subr.bf16.mxu0 0
        %992 = vmatpush1.bf16.msra.mxu0 %v937
        %993 = vmatprep.subr.bf16.mxu0 0
        %994 = vmatpush1.bf16.msra.mxu0 0
        %995 = vmatprep.subr.bf16.mxu0 0
        %996 = vmatpush1.bf16.msra.mxu0 0
        %997 = vmatprep.mubr.bf16.mxu0 %v954
        %998 = vmatmul.mubr.bf16.gmra.mrb[0].mxu0 %v856
        %v999 = vpop.f32.mrb[0].mxu0
        %v1000 = vpop.f32.mrb[0].mxu0
        %v1001 = vpop.f32.mrb[0].mxu0
        %v1002 = vadd.f32 0.0, %v1001
        %v1003 = vpop.f32.mrb[0].mxu0
        %1004 = vmatprep.mubr.bf16.mxu0 %v957
        %1005 = vmatmul.mubr.bf16.gmra.mrb[0].mxu0 %v858
        %v1006 = vpop.f32.mrb[0].mxu0
        %v1007 = vadd.f32 0.0, %v1006
        %v1008 = vpop.f32.mrb[0].mxu0
        %v1009 = vpop.f32.mrb[0].mxu0
        %v1010 = vpop.f32.mrb[0].mxu0
        %1011 = vmatprep.mubr.bf16.mxu0 %v960
        %1012 = vmatmul.mubr.bf16.gmra.mrb[0].mxu0 %v860
        %v1013 = vpop.f32.mrb[0].mxu0
        %v1014 = vadd.f32 0.0, %v1013
        %v1015 = vpop.f32.mrb[0].mxu0
        %v1016 = vpop.f32.mrb[0].mxu0
        %v1017 = vadd.f32 0.0, %v1016
        %v1018 = vpop.f32.mrb[0].mxu0
        %1019 = vmatprep.mubr.bf16.mxu0 %v963
        %1020 = vmatmul.mubr.bf16.gmra.mrb[0].mxu0 %v862
        %v1021 = vpop.f32.mrb[0].mxu0
        %v1022 = vpop.f32.mrb[0].mxu0
        %v1023 = vpop.f32.mrb[0].mxu0
        %v1024 = vpop.f32.mrb[0].mxu0
        %1025 = vdwg.mxu0
        %vm1026 = vcmask 195584
        %1027 = vst.msk [vmem:[%s274] sm:$0xff] %vm1026, %v1002
        %1028 = vst.msk [vmem:[%s274 + $0x8] sm:$0xff] %vm1026, %v1007
        %s1029 = scalar_lea.vmem %s274, 16 [#allocation3]
        %1030 = vst.msk [vmem:[%s1029] sm:$0xff] %vm1026, %v1014
        %1031 = vst.msk [vmem:[%s1029 + $0x8] sm:$0xff] %vm1026, %v1017
        %s1032 = sand.u32 %s181, 1
        %s1033 = scalar_lea.sflag [#allocation4], %s1032
        %s1034 = sand.u32 %s181, 1
        %s1035 = smul.addr %s1034, 32
        %s1036 = scalar_lea.vmem [#allocation3], %s1035
        // Predicated region
        $region49: #{tpu_custom_call.1} parent=47 // pred_check
          %p1037 = pneg %p191
        $region50: #{tpu_custom_call.1} parent=47 // pred_check_branch
          %1039 = sbr.rel (%p1037) target = $region52
        $region51: #{tpu_custom_call.1} parent=47 // pred_region
          %s1040 = smul.u32 2, %s21
          %s1042 = ssub.s32 512, 512
          %1043 = vsyncadd %s1033, %s1042
          %s1044 = smul.addr %s1040, 2
          %s1045 = smul.addr %s1044, 128
          %s1046 = scalar_lea.hbm %s7, %s1045
          %s1047 = sshll.u32 %s1036, 4
          %s1048 = int_to_ptr.vmem [resolvable:$true] %s1047
          %1053 = dma.vmem_to_hbm [thread:$0]  %s1048, 512, %s1046, %s1033, 128, 128, 8
        $region52: #{tpu_custom_call.1} parent=47 // pred_fallthru
          _
      $region48: #{tpu_custom_call.1} parent=5 // pred_fallthru
        _
      %p1054 = scmp.le.s32.totalorder 2, %s16
      // Predicated region
      $region53: #{tpu_custom_call.1} parent=5 // pred_check
        %p1055 = pneg %p1054
      $region54: #{tpu_custom_call.1} parent=5 // pred_check_branch
        %1057 = sbr.rel (%p1055) target = $region56
      $region55: #{tpu_custom_call.1} parent=5 // pred_region
        %s1058 = ssub.s32 %s16, 2
        // Predicated region
        $region57: #{tpu_custom_call.1} parent=55 // pred_check
          %p1059 = pneg %p197
        $region58: #{tpu_custom_call.1} parent=55 // pred_check_branch
          %1061 = sbr.rel (%p1059) target = $region60
        $region59: #{tpu_custom_call.1} parent=55 // pred_region
          %s1062 = sand.u32 %s182, 1
          %s1063 = scalar_lea.sflag [#allocation4], %s1062
          %s1064 = sand.u32 %s182, 1
          %s1065 = smul.addr %s1064, 32
          %s1066 = scalar_lea.vmem [#allocation3], %s1065
          %1067 = dma.done %s1063, 512
        $region60: #{tpu_custom_call.1} parent=55 // pred_fallthru
          _
      $region56: #{tpu_custom_call.1} parent=5 // pred_fallthru
        _
    $region6: #{tpu_custom_call.1} parent=1 // loop_footer
      %s20 = sadd.s32 1, %s16
    $region7: #{tpu_custom_call.1} parent=1 // loop_footer_branch
      %15 = sbr.rel target = $region3
    $region8: #{tpu_custom_call.1} parent=1 // loop_exit
      _
    %1068 = vsyncpa [#allocation4], 1
    %s1069 = scalar_lea.sflag [#allocation4], 1
    %1070 = vsyncpa %s1069, 1

</llo_original>
